<compile_context>
chip_gen: v7x
topology: tpu7x:2x2x1
jax: 0.10.0
libtpu: 0.0.40
codegen_flags: <defaults>
</compile_context>

<pallas_src>
import functools

import jax
import jax.numpy as jnp
from jax.experimental import pallas as pl
from jax.experimental.pallas import tpu as pltpu


# ---------------------------------------------------------------------------
# Helpers
# ---------------------------------------------------------------------------

def _round_up(n, m):
    return ((n + m - 1) // m) * m


def _pad2d(a, rows, cols):
    r, c = a.shape
    return jnp.pad(a, ((0, rows - r), (0, cols - c)))


# ---------------------------------------------------------------------------
# Fused kernel factory
# ---------------------------------------------------------------------------

def _make_fused_kernel(has_proj, pad_width):
    """Build a fused kernel for a static block structure.

    Ref order: x_ref, then per residual block
      - projection block:  w1s_ref ([P,2P] = [w1|ws]), b1s_ref ([1,2P]),
                           w2_ref ([P,P]), b2_ref ([1,P])
      - identity block:    w1_ref, b1_ref, w2_ref, b2_ref
    then head wo_ref ([P,P]), bo_ref ([1,P]), and finally o_ref ([TB,P]).

    All padded lanes carry zeros through every layer (zero weights/biases,
    ReLU(0)=0), so padding never perturbs the real outputs.
    """
    P = pad_width

    def kernel(*refs):
        x_ref = refs[0]
        o_ref = refs[-1]
        x = x_ref[...]
        idx = 1
        for proj in has_proj:
            if proj:
                w1s = refs[idx][...]
                b1s = refs[idx + 1][...]
                w2 = refs[idx + 2][...]
                b2 = refs[idx + 3][...]
                idx += 4
                # Single matmul for main path + shortcut: x @ [w1 | ws]
                y = jnp.dot(x, w1s, preferred_element_type=jnp.float32) + b1s
                h = jnp.maximum(y[:, :P], 0.0)   # relu1 (+ dropout == identity)
                sc = y[:, P:]                    # projection shortcut
                h = jnp.dot(h, w2, preferred_element_type=jnp.float32) + b2
                x = jnp.maximum(h + sc, 0.0)     # += identity ; relu2
            else:
                w1 = refs[idx][...]
                b1 = refs[idx + 1][...]
                w2 = refs[idx + 2][...]
                b2 = refs[idx + 3][...]
                idx += 4
                h = jnp.maximum(
                    jnp.dot(x, w1, preferred_element_type=jnp.float32) + b1, 0.0)
                h = jnp.dot(h, w2, preferred_element_type=jnp.float32) + b2
                x = jnp.maximum(h + x, 0.0)      # identity shortcut ; relu2
        wo = refs[idx][...]
        bo = refs[idx + 1][...]
        logits = jnp.dot(x, wo, preferred_element_type=jnp.float32) + bo
        o_ref[...] = jax.nn.sigmoid(logits)      # lane-dense [TB, P] store

    return kernel


# ---------------------------------------------------------------------------
# Wrapper: pads, packs params, builds the single pallas_call
# ---------------------------------------------------------------------------

@functools.partial(jax.jit, static_argnames=("block_batch",))
def resnet_binary_classifier(x, block_params, head_params, *, block_batch=512):
    B, F = x.shape

    # Common padded lane width (multiple of 128) covering every layer.
    dims = [F] + [int(p["w1"].shape[1]) for p in block_params] \
               + [int(head_params["w"].shape[1])]
    P = max(128, _round_up(max(dims), 128))

    # Batch: pad to a multiple of 8 (f32 sublane); tile TB rows per grid step.
    TB = max(8, min(_round_up(B, 8), _round_up(block_batch, 8)))
    B_pad = _round_up(max(B, 8), TB)
    x_p = _pad2d(x.astype(jnp.float32), B_pad, P)

    has_proj = tuple("ws" in p for p in block_params)
    kernel = _make_fused_kernel(has_proj, P)

    def w_spec(shape):
        # Weights/biases: same block for every grid step -> stay VMEM-resident.
        return pl.BlockSpec(shape, lambda i: (0, 0))

    flat_args = [x_p]
    in_specs = [pl.BlockSpec((TB, P), lambda i: (i, 0))]

    for p in block_params:
        w1p = _pad2d(p["w1"], P, P)
        b1p = _pad2d(p["b1"], 1, P)
        w2p = _pad2d(p["w2"], P, P)
        b2p = _pad2d(p["b2"], 1, P)
        if "ws" in p:
            w1s = jnp.concatenate([w1p, _pad2d(p["ws"], P, P)], axis=1)  # [P, 2P]
            b1s = jnp.concatenate([b1p, _pad2d(p["bs"], 1, P)], axis=1)  # [1, 2P]
            flat_args += [w1s, b1s, w2p, b2p]
            in_specs += [w_spec((P, 2 * P)), w_spec((1, 2 * P)),
                         w_spec((P, P)), w_spec((1, P))]
        else:
            flat_args += [w1p, b1p, w2p, b2p]
            in_specs += [w_spec((P, P)), w_spec((1, P)),
                         w_spec((P, P)), w_spec((1, P))]

    flat_args += [_pad2d(head_params["w"], P, P), _pad2d(head_params["b"], 1, P)]
    in_specs += [w_spec((P, P)), w_spec((1, P))]

    out_padded = pl.pallas_call(
        kernel,
        out_shape=jax.ShapeDtypeStruct((B_pad, P), jnp.float32),
        grid=(B_pad // TB,),
        in_specs=in_specs,
        out_specs=pl.BlockSpec((TB, P), lambda i: (i, 0)),
        compiler_params=pltpu.CompilerParams(
            dimension_semantics=("parallel",)),
    )(*flat_args)

    return out_padded[:B, :2]


# ---------------------------------------------------------------------------
# Deterministic parameter initialization (mimics nn.Linear uniform init)
# ---------------------------------------------------------------------------

def _init_linear(key, in_dim, out_dim):
    kw, kb = jax.random.split(key)
    bound = 1.0 / jnp.sqrt(in_dim)
    w = jax.random.uniform(kw, (in_dim, out_dim), jnp.float32, -bound, bound)
    b = jax.random.uniform(kb, (1, out_dim), jnp.float32, -bound, bound)
    return w, b


def init_params(key, input_size, layer_sizes):
    block_params = []
    current = input_size
    for out_size in layer_sizes:
        key, k1, k2, k3 = jax.random.split(key, 4)
        w1, b1 = _init_linear(k1, current, out_size)
        w2, b2 = _init_linear(k2, out_size, out_size)
        p = {"w1": w1, "b1": b1, "w2": w2, "b2": b2}
        if current != out_size:
            ws, bs = _init_linear(k3, current, out_size)
            p["ws"] = ws
            p["bs"] = bs
        block_params.append(p)
        current = out_size
    key, kh = jax.random.split(key)
    wo, bo = _init_linear(kh, current, 2)
    head_params = {"w": wo, "b": bo}
    return block_params, head_params


# ---------------------------------------------------------------------------
# Pure-JAX reference for a sanity check
# ---------------------------------------------------------------------------

def reference_forward(x, block_params, head_params):
    for p in block_params:
        ident = x @ p["ws"] + p["bs"] if "ws" in p else x
        h = jnp.maximum(x @ p["w1"] + p["b1"], 0.0)
        h = h @ p["w2"] + p["b2"]
        x = jnp.maximum(h + ident, 0.0)
    return jax.nn.sigmoid(x @ head_params["w"] + head_params["b"])


# ---------------------------------------------------------------------------
# Main
# ---------------------------------------------------------------------------

if __name__ == "__main__":
    key = jax.random.PRNGKey(0)
    kx, kp = jax.random.split(key)

    batch = 4
    input_size = 16
    layer_sizes = [32, 32, 16]   # first and last blocks use projection shortcuts

    x = jax.random.normal(kx, (batch, input_size), dtype=jnp.float32)
    block_params, head_params = init_params(kp, input_size, layer_sizes)

    out = resnet_binary_classifier(x, block_params, head_params)
    out = jax.block_until_ready(out)

    ref = reference_forward(x, block_params, head_params)
    assert out.shape == (batch, 2), out.shape
    assert jnp.allclose(out, ref, atol=1e-5, rtol=1e-5), "mismatch vs reference"

    print("KERNEL_OK")
</pallas_src>

<mosaic_0001>
module attributes {stable_mosaic.version = 11 : i64} {
  func.func @kernel(%arg0: i32, %arg1: memref<8x128xf32, #tpu.memory_space<vmem>>, %arg2: memref<128x256xf32, #tpu.memory_space<vmem>>, %arg3: memref<1x256xf32, #tpu.memory_space<vmem>>, %arg4: memref<128x128xf32, #tpu.memory_space<vmem>>, %arg5: memref<1x128xf32, #tpu.memory_space<vmem>>, %arg6: memref<128x128xf32, #tpu.memory_space<vmem>>, %arg7: memref<1x128xf32, #tpu.memory_space<vmem>>, %arg8: memref<128x128xf32, #tpu.memory_space<vmem>>, %arg9: memref<1x128xf32, #tpu.memory_space<vmem>>, %arg10: memref<128x256xf32, #tpu.memory_space<vmem>>, %arg11: memref<1x256xf32, #tpu.memory_space<vmem>>, %arg12: memref<128x128xf32, #tpu.memory_space<vmem>>, %arg13: memref<1x128xf32, #tpu.memory_space<vmem>>, %arg14: memref<128x128xf32, #tpu.memory_space<vmem>>, %arg15: memref<1x128xf32, #tpu.memory_space<vmem>>, %arg16: memref<8x128xf32, #tpu.memory_space<vmem>>) attributes {dimension_semantics = [#tpu.dimension_semantics<parallel>], iteration_bounds = array<i64: 1>, scalar_prefetch = 0 : i64, scratch_operands = 0 : i64, tpu.core_type = #tpu.core_type<tc>, window_params = [{transform_indices = @transform_0, window_bounds = array<i64: 8, 128>}, {pipeline_mode = #tpu.pipeline_mode<synchronous>, transform_indices = @transform_1, window_bounds = array<i64: 128, 256>}, {pipeline_mode = #tpu.pipeline_mode<synchronous>, transform_indices = @transform_2, window_bounds = array<i64: 1, 256>}, {pipeline_mode = #tpu.pipeline_mode<synchronous>, transform_indices = @transform_3, window_bounds = array<i64: 128, 128>}, {pipeline_mode = #tpu.pipeline_mode<synchronous>, transform_indices = @transform_4, window_bounds = array<i64: 1, 128>}, {pipeline_mode = #tpu.pipeline_mode<synchronous>, transform_indices = @transform_5, window_bounds = array<i64: 128, 128>}, {pipeline_mode = #tpu.pipeline_mode<synchronous>, transform_indices = @transform_6, window_bounds = array<i64: 1, 128>}, {pipeline_mode = #tpu.pipeline_mode<synchronous>, transform_indices = @transform_7, window_bounds = array<i64: 128, 128>}, {pipeline_mode = #tpu.pipeline_mode<synchronous>, transform_indices = @transform_8, window_bounds = array<i64: 1, 128>}, {pipeline_mode = #tpu.pipeline_mode<synchronous>, transform_indices = @transform_9, window_bounds = array<i64: 128, 256>}, {pipeline_mode = #tpu.pipeline_mode<synchronous>, transform_indices = @transform_10, window_bounds = array<i64: 1, 256>}, {pipeline_mode = #tpu.pipeline_mode<synchronous>, transform_indices = @transform_11, window_bounds = array<i64: 128, 128>}, {pipeline_mode = #tpu.pipeline_mode<synchronous>, transform_indices = @transform_12, window_bounds = array<i64: 1, 128>}, {pipeline_mode = #tpu.pipeline_mode<synchronous>, transform_indices = @transform_13, window_bounds = array<i64: 128, 128>}, {pipeline_mode = #tpu.pipeline_mode<synchronous>, transform_indices = @transform_14, window_bounds = array<i64: 1, 128>}, {transform_indices = @transform_15, window_bounds = array<i64: 8, 128>}]} {
    %c0 = arith.constant 0 : index
    %c0_0 = arith.constant 0 : index
    %0 = vector.load %arg1[%c0, %c0_0] : memref<8x128xf32, #tpu.memory_space<vmem>>, vector<8x128xf32>
    %c0_1 = arith.constant 0 : index
    %c0_2 = arith.constant 0 : index
    %1 = vector.load %arg2[%c0_1, %c0_2] : memref<128x256xf32, #tpu.memory_space<vmem>>, vector<128x256xf32>
    %c0_3 = arith.constant 0 : index
    %c0_4 = arith.constant 0 : index
    %2 = vector.load %arg3[%c0_3, %c0_4] : memref<1x256xf32, #tpu.memory_space<vmem>>, vector<1x256xf32>
    %c0_5 = arith.constant 0 : index
    %c0_6 = arith.constant 0 : index
    %3 = vector.load %arg4[%c0_5, %c0_6] : memref<128x128xf32, #tpu.memory_space<vmem>>, vector<128x128xf32>
    %c0_7 = arith.constant 0 : index
    %c0_8 = arith.constant 0 : index
    %4 = vector.load %arg5[%c0_7, %c0_8] : memref<1x128xf32, #tpu.memory_space<vmem>>, vector<1x128xf32>
    %cst = arith.constant dense<0.000000e+00> : vector<8x256xf32>
    %5 = tpu.matmul %0, %1, %cst {dimension_numbers = #tpu.dot_dimension_numbers<[1], [0], [0], [1], [0, 0, 1, 1], [], []>} : vector<8x128xf32>, vector<128x256xf32>, vector<8x256xf32> -> vector<8x256xf32>
    %6 = vector.broadcast %2 : vector<1x256xf32> to vector<8x256xf32>
    %7 = arith.addf %5, %6 : vector<8x256xf32>
    %8 = vector.extract_strided_slice %7 {offsets = [0, 0], sizes = [8, 128], strides = [1, 1]} : vector<8x256xf32> to vector<8x128xf32>
    %cst_9 = arith.constant 0.000000e+00 : f32
    %9 = vector.broadcast %cst_9 : f32 to vector<8x128xf32>
    %10 = arith.maximumf %8, %9 : vector<8x128xf32>
    %11 = vector.extract_strided_slice %7 {offsets = [0, 128], sizes = [8, 128], strides = [1, 1]} : vector<8x256xf32> to vector<8x128xf32>
    %cst_10 = arith.constant dense<0.000000e+00> : vector<8x128xf32>
    %12 = tpu.matmul %10, %3, %cst_10 {dimension_numbers = #tpu.dot_dimension_numbers<[1], [0], [0], [1], [0, 0, 1, 1], [], []>} : vector<8x128xf32>, vector<128x128xf32>, vector<8x128xf32> -> vector<8x128xf32>
    %13 = vector.broadcast %4 : vector<1x128xf32> to vector<8x128xf32>
    %14 = arith.addf %12, %13 : vector<8x128xf32>
    %15 = arith.addf %14, %11 : vector<8x128xf32>
    %cst_11 = arith.constant 0.000000e+00 : f32
    %16 = vector.broadcast %cst_11 : f32 to vector<8x128xf32>
    %17 = arith.maximumf %15, %16 : vector<8x128xf32>
    %c0_12 = arith.constant 0 : index
    %c0_13 = arith.constant 0 : index
    %18 = vector.load %arg6[%c0_12, %c0_13] : memref<128x128xf32, #tpu.memory_space<vmem>>, vector<128x128xf32>
    %c0_14 = arith.constant 0 : index
    %c0_15 = arith.constant 0 : index
    %19 = vector.load %arg7[%c0_14, %c0_15] : memref<1x128xf32, #tpu.memory_space<vmem>>, vector<1x128xf32>
    %c0_16 = arith.constant 0 : index
    %c0_17 = arith.constant 0 : index
    %20 = vector.load %arg8[%c0_16, %c0_17] : memref<128x128xf32, #tpu.memory_space<vmem>>, vector<128x128xf32>
    %c0_18 = arith.constant 0 : index
    %c0_19 = arith.constant 0 : index
    %21 = vector.load %arg9[%c0_18, %c0_19] : memref<1x128xf32, #tpu.memory_space<vmem>>, vector<1x128xf32>
    %cst_20 = arith.constant dense<0.000000e+00> : vector<8x128xf32>
    %22 = tpu.matmul %17, %18, %cst_20 {dimension_numbers = #tpu.dot_dimension_numbers<[1], [0], [0], [1], [0, 0, 1, 1], [], []>} : vector<8x128xf32>, vector<128x128xf32>, vector<8x128xf32> -> vector<8x128xf32>
    %23 = vector.broadcast %19 : vector<1x128xf32> to vector<8x128xf32>
    %24 = arith.addf %22, %23 : vector<8x128xf32>
    %cst_21 = arith.constant 0.000000e+00 : f32
    %25 = vector.broadcast %cst_21 : f32 to vector<8x128xf32>
    %26 = arith.maximumf %24, %25 : vector<8x128xf32>
    %cst_22 = arith.constant dense<0.000000e+00> : vector<8x128xf32>
    %27 = tpu.matmul %26, %20, %cst_22 {dimension_numbers = #tpu.dot_dimension_numbers<[1], [0], [0], [1], [0, 0, 1, 1], [], []>} : vector<8x128xf32>, vector<128x128xf32>, vector<8x128xf32> -> vector<8x128xf32>
    %28 = vector.broadcast %21 : vector<1x128xf32> to vector<8x128xf32>
    %29 = arith.addf %27, %28 : vector<8x128xf32>
    %30 = arith.addf %29, %17 : vector<8x128xf32>
    %cst_23 = arith.constant 0.000000e+00 : f32
    %31 = vector.broadcast %cst_23 : f32 to vector<8x128xf32>
    %32 = arith.maximumf %30, %31 : vector<8x128xf32>
    %c0_24 = arith.constant 0 : index
    %c0_25 = arith.constant 0 : index
    %33 = vector.load %arg10[%c0_24, %c0_25] : memref<128x256xf32, #tpu.memory_space<vmem>>, vector<128x256xf32>
    %c0_26 = arith.constant 0 : index
    %c0_27 = arith.constant 0 : index
    %34 = vector.load %arg11[%c0_26, %c0_27] : memref<1x256xf32, #tpu.memory_space<vmem>>, vector<1x256xf32>
    %c0_28 = arith.constant 0 : index
    %c0_29 = arith.constant 0 : index
    %35 = vector.load %arg12[%c0_28, %c0_29] : memref<128x128xf32, #tpu.memory_space<vmem>>, vector<128x128xf32>
    %c0_30 = arith.constant 0 : index
    %c0_31 = arith.constant 0 : index
    %36 = vector.load %arg13[%c0_30, %c0_31] : memref<1x128xf32, #tpu.memory_space<vmem>>, vector<1x128xf32>
    %cst_32 = arith.constant dense<0.000000e+00> : vector<8x256xf32>
    %37 = tpu.matmul %32, %33, %cst_32 {dimension_numbers = #tpu.dot_dimension_numbers<[1], [0], [0], [1], [0, 0, 1, 1], [], []>} : vector<8x128xf32>, vector<128x256xf32>, vector<8x256xf32> -> vector<8x256xf32>
    %38 = vector.broadcast %34 : vector<1x256xf32> to vector<8x256xf32>
    %39 = arith.addf %37, %38 : vector<8x256xf32>
    %40 = vector.extract_strided_slice %39 {offsets = [0, 0], sizes = [8, 128], strides = [1, 1]} : vector<8x256xf32> to vector<8x128xf32>
    %cst_33 = arith.constant 0.000000e+00 : f32
    %41 = vector.broadcast %cst_33 : f32 to vector<8x128xf32>
    %42 = arith.maximumf %40, %41 : vector<8x128xf32>
    %43 = vector.extract_strided_slice %39 {offsets = [0, 128], sizes = [8, 128], strides = [1, 1]} : vector<8x256xf32> to vector<8x128xf32>
    %cst_34 = arith.constant dense<0.000000e+00> : vector<8x128xf32>
    %44 = tpu.matmul %42, %35, %cst_34 {dimension_numbers = #tpu.dot_dimension_numbers<[1], [0], [0], [1], [0, 0, 1, 1], [], []>} : vector<8x128xf32>, vector<128x128xf32>, vector<8x128xf32> -> vector<8x128xf32>
    %45 = vector.broadcast %36 : vector<1x128xf32> to vector<8x128xf32>
    %46 = arith.addf %44, %45 : vector<8x128xf32>
    %47 = arith.addf %46, %43 : vector<8x128xf32>
    %cst_35 = arith.constant 0.000000e+00 : f32
    %48 = vector.broadcast %cst_35 : f32 to vector<8x128xf32>
    %49 = arith.maximumf %47, %48 : vector<8x128xf32>
    %c0_36 = arith.constant 0 : index
    %c0_37 = arith.constant 0 : index
    %50 = vector.load %arg14[%c0_36, %c0_37] : memref<128x128xf32, #tpu.memory_space<vmem>>, vector<128x128xf32>
    %c0_38 = arith.constant 0 : index
    %c0_39 = arith.constant 0 : index
    %51 = vector.load %arg15[%c0_38, %c0_39] : memref<1x128xf32, #tpu.memory_space<vmem>>, vector<1x128xf32>
    %cst_40 = arith.constant dense<0.000000e+00> : vector<8x128xf32>
    %52 = tpu.matmul %49, %50, %cst_40 {dimension_numbers = #tpu.dot_dimension_numbers<[1], [0], [0], [1], [0, 0, 1, 1], [], []>} : vector<8x128xf32>, vector<128x128xf32>, vector<8x128xf32> -> vector<8x128xf32>
    %53 = vector.broadcast %51 : vector<1x128xf32> to vector<8x128xf32>
    %54 = arith.addf %52, %53 : vector<8x128xf32>
    %55 = arith.negf %54 : vector<8x128xf32>
    %56 = math.exp %55 : vector<8x128xf32>
    %cst_41 = arith.constant 1.000000e+00 : f32
    %57 = vector.broadcast %cst_41 : f32 to vector<8x128xf32>
    %58 = arith.addf %57, %56 : vector<8x128xf32>
    %59 = arith.divf %57, %58 : vector<8x128xf32>
    %c0_42 = arith.constant 0 : index
    %c0_43 = arith.constant 0 : index
    %60 = vector.load %arg16[%c0_42, %c0_43] : memref<8x128xf32, #tpu.memory_space<vmem>>, vector<8x128xf32>
    tpu.vector_store %arg16[%c0_42, %c0_43], %59 {strides = array<i32>} : memref<8x128xf32, #tpu.memory_space<vmem>>, vector<8x128xf32>,
    return
  }
  func.func @transform_0(%arg0: i32) -> (i32, i32) {
    %c0_i32 = arith.constant 0 : i32
    %c0_i32_0 = arith.constant 0 : i32
    return %arg0, %c0_i32 : i32, i32
  }
  func.func @transform_1(%arg0: i32) -> (i32, i32) {
    %c0_i32 = arith.constant 0 : i32
    %c0_i32_0 = arith.constant 0 : i32
    %c0_i32_1 = arith.constant 0 : i32
    return %c0_i32, %c0_i32_0 : i32, i32
  }
  func.func @transform_2(%arg0: i32) -> (i32, i32) {
    %c0_i32 = arith.constant 0 : i32
    %c0_i32_0 = arith.constant 0 : i32
    %c0_i32_1 = arith.constant 0 : i32
    return %c0_i32, %c0_i32_0 : i32, i32
  }
  func.func @transform_3(%arg0: i32) -> (i32, i32) {
    %c0_i32 = arith.constant 0 : i32
    %c0_i32_0 = arith.constant 0 : i32
    %c0_i32_1 = arith.constant 0 : i32
    return %c0_i32, %c0_i32_0 : i32, i32
  }
  func.func @transform_4(%arg0: i32) -> (i32, i32) {
    %c0_i32 = arith.constant 0 : i32
    %c0_i32_0 = arith.constant 0 : i32
    %c0_i32_1 = arith.constant 0 : i32
    return %c0_i32, %c0_i32_0 : i32, i32
  }
  func.func @transform_5(%arg0: i32) -> (i32, i32) {
    %c0_i32 = arith.constant 0 : i32
    %c0_i32_0 = arith.constant 0 : i32
    %c0_i32_1 = arith.constant 0 : i32
    return %c0_i32, %c0_i32_0 : i32, i32
  }
  func.func @transform_6(%arg0: i32) -> (i32, i32) {
    %c0_i32 = arith.constant 0 : i32
    %c0_i32_0 = arith.constant 0 : i32
    %c0_i32_1 = arith.constant 0 : i32
    return %c0_i32, %c0_i32_0 : i32, i32
  }
  func.func @transform_7(%arg0: i32) -> (i32, i32) {
    %c0_i32 = arith.constant 0 : i32
    %c0_i32_0 = arith.constant 0 : i32
    %c0_i32_1 = arith.constant 0 : i32
    return %c0_i32, %c0_i32_0 : i32, i32
  }
  func.func @transform_8(%arg0: i32) -> (i32, i32) {
    %c0_i32 = arith.constant 0 : i32
    %c0_i32_0 = arith.constant 0 : i32
    %c0_i32_1 = arith.constant 0 : i32
    return %c0_i32, %c0_i32_0 : i32, i32
  }
  func.func @transform_9(%arg0: i32) -> (i32, i32) {
    %c0_i32 = arith.constant 0 : i32
    %c0_i32_0 = arith.constant 0 : i32
    %c0_i32_1 = arith.constant 0 : i32
    return %c0_i32, %c0_i32_0 : i32, i32
  }
  func.func @transform_10(%arg0: i32) -> (i32, i32) {
    %c0_i32 = arith.constant 0 : i32
    %c0_i32_0 = arith.constant 0 : i32
    %c0_i32_1 = arith.constant 0 : i32
    return %c0_i32, %c0_i32_0 : i32, i32
  }
  func.func @transform_11(%arg0: i32) -> (i32, i32) {
    %c0_i32 = arith.constant 0 : i32
    %c0_i32_0 = arith.constant 0 : i32
    %c0_i32_1 = arith.constant 0 : i32
    return %c0_i32, %c0_i32_0 : i32, i32
  }
  func.func @transform_12(%arg0: i32) -> (i32, i32) {
    %c0_i32 = arith.constant 0 : i32
    %c0_i32_0 = arith.constant 0 : i32
    %c0_i32_1 = arith.constant 0 : i32
    return %c0_i32, %c0_i32_0 : i32, i32
  }
  func.func @transform_13(%arg0: i32) -> (i32, i32) {
    %c0_i32 = arith.constant 0 : i32
    %c0_i32_0 = arith.constant 0 : i32
    %c0_i32_1 = arith.constant 0 : i32
    return %c0_i32, %c0_i32_0 : i32, i32
  }
  func.func @transform_14(%arg0: i32) -> (i32, i32) {
    %c0_i32 = arith.constant 0 : i32
    %c0_i32_0 = arith.constant 0 : i32
    %c0_i32_1 = arith.constant 0 : i32
    return %c0_i32, %c0_i32_0 : i32, i32
  }
  func.func @transform_15(%arg0: i32) -> (i32, i32) {
    %c0_i32 = arith.constant 0 : i32
    %c0_i32_0 = arith.constant 0 : i32
    return %arg0, %c0_i32 : i32, i32
  }
}

</mosaic_0001>

<llo_original>
// kernel: resnet_binary_classifier.1
$region0: #{resnet_binary_classifier.1}
  #allocation0 [shape = 'u32[]', space=smem, size = 0x4, offset = 0x4, fixed_abs, tag = 'smem constant byte address 0x4 - core index']
  #allocation1 [shape = 'u32[144,128]{1,0:T(1,128)}', space=vmem, size = 0x12000, scoped, tag = 'internal scratch']
  %s0 = inlined_call_operand.vmem [shape: f32[8,128], index: 0, kind: input, shape index: {}]
  %s1 = inlined_call_operand.vmem [shape: f32[128,256], index: 1, kind: input, shape index: {}]
  %s2 = inlined_call_operand.vmem [shape: f32[1,256], index: 2, kind: input, shape index: {}]
  %s3 = inlined_call_operand.vmem [shape: f32[128,128], index: 3, kind: input, shape index: {}]
  %s4 = inlined_call_operand.vmem [shape: f32[1,128], index: 4, kind: input, shape index: {}]
  %s5 = inlined_call_operand.vmem [shape: f32[128,128], index: 5, kind: input, shape index: {}]
  %s6 = inlined_call_operand.vmem [shape: f32[1,128], index: 6, kind: input, shape index: {}]
  %s7 = inlined_call_operand.vmem [shape: f32[128,128], index: 7, kind: input, shape index: {}]
  %s8 = inlined_call_operand.vmem [shape: f32[1,128], index: 8, kind: input, shape index: {}]
  %s9 = inlined_call_operand.vmem [shape: f32[128,256], index: 9, kind: input, shape index: {}]
  %s10 = inlined_call_operand.vmem [shape: f32[1,256], index: 10, kind: input, shape index: {}]
  %s11 = inlined_call_operand.vmem [shape: f32[128,128], index: 11, kind: input, shape index: {}]
  %s12 = inlined_call_operand.vmem [shape: f32[1,128], index: 12, kind: input, shape index: {}]
  %s13 = inlined_call_operand.vmem [shape: f32[128,128], index: 13, kind: input, shape index: {}]
  %s14 = inlined_call_operand.vmem [shape: f32[1,128], index: 14, kind: input, shape index: {}]
  %s15 = inlined_call_operand.vmem [shape: f32[8,128], index: 15, kind: output, shape index: {}]
  %s16 = sld [smem:[#allocation0]]
  $region70: #{resnet_binary_classifier.1} parent=0
    _
  %s18 = ssub.s32 1, %s16
  %s19 = scalar_select 0, %s18, %s16
  // Predicated region
  $region2: #{resnet_binary_classifier.1} parent=0 // pred_check
    _
  $region3: #{resnet_binary_classifier.1} parent=0 // pred_check_branch
    %21 = sbr.rel (0) target = $region5
  $region4: #{resnet_binary_classifier.1} parent=0 // pred_region
    _
  $region5: #{resnet_binary_classifier.1} parent=0 // pred_fallthru
    _
  // Predicated region
  $region6: #{resnet_binary_classifier.1} parent=0 // pred_check
    _
  $region7: #{resnet_binary_classifier.1} parent=0 // pred_check_branch
    %23 = sbr.rel (0) target = $region9
  $region8: #{resnet_binary_classifier.1} parent=0 // pred_region
    _
  $region9: #{resnet_binary_classifier.1} parent=0 // pred_fallthru
    _
  // Predicated region
  $region10: #{resnet_binary_classifier.1} parent=0 // pred_check
    _
  $region11: #{resnet_binary_classifier.1} parent=0 // pred_check_branch
    %25 = sbr.rel (0) target = $region13
  $region12: #{resnet_binary_classifier.1} parent=0 // pred_region
    _
  $region13: #{resnet_binary_classifier.1} parent=0 // pred_fallthru
    _
  // Predicated region
  $region14: #{resnet_binary_classifier.1} parent=0 // pred_check
    _
  $region15: #{resnet_binary_classifier.1} parent=0 // pred_check_branch
    %27 = sbr.rel (0) target = $region17
  $region16: #{resnet_binary_classifier.1} parent=0 // pred_region
    _
  $region17: #{resnet_binary_classifier.1} parent=0 // pred_fallthru
    _
  // Predicated region
  $region18: #{resnet_binary_classifier.1} parent=0 // pred_check
    _
  $region19: #{resnet_binary_classifier.1} parent=0 // pred_check_branch
    %29 = sbr.rel (0) target = $region21
  $region20: #{resnet_binary_classifier.1} parent=0 // pred_region
    _
  $region21: #{resnet_binary_classifier.1} parent=0 // pred_fallthru
    _
  // Predicated region
  $region22: #{resnet_binary_classifier.1} parent=0 // pred_check
    _
  $region23: #{resnet_binary_classifier.1} parent=0 // pred_check_branch
    %31 = sbr.rel (0) target = $region25
  $region24: #{resnet_binary_classifier.1} parent=0 // pred_region
    _
  $region25: #{resnet_binary_classifier.1} parent=0 // pred_fallthru
    _
  // Predicated region
  $region26: #{resnet_binary_classifier.1} parent=0 // pred_check
    _
  $region27: #{resnet_binary_classifier.1} parent=0 // pred_check_branch
    %33 = sbr.rel (0) target = $region29
  $region28: #{resnet_binary_classifier.1} parent=0 // pred_region
    _
  $region29: #{resnet_binary_classifier.1} parent=0 // pred_fallthru
    _
  // Predicated region
  $region30: #{resnet_binary_classifier.1} parent=0 // pred_check
    _
  $region31: #{resnet_binary_classifier.1} parent=0 // pred_check_branch
    %35 = sbr.rel (0) target = $region33
  $region32: #{resnet_binary_classifier.1} parent=0 // pred_region
    _
  $region33: #{resnet_binary_classifier.1} parent=0 // pred_fallthru
    _
  // Predicated region
  $region34: #{resnet_binary_classifier.1} parent=0 // pred_check
    _
  $region35: #{resnet_binary_classifier.1} parent=0 // pred_check_branch
    %37 = sbr.rel (0) target = $region37
  $region36: #{resnet_binary_classifier.1} parent=0 // pred_region
    _
  $region37: #{resnet_binary_classifier.1} parent=0 // pred_fallthru
    _
  // Predicated region
  $region38: #{resnet_binary_classifier.1} parent=0 // pred_check
    _
  $region39: #{resnet_binary_classifier.1} parent=0 // pred_check_branch
    %39 = sbr.rel (0) target = $region41
  $region40: #{resnet_binary_classifier.1} parent=0 // pred_region
    _
  $region41: #{resnet_binary_classifier.1} parent=0 // pred_fallthru
    _
  // Predicated region
  $region42: #{resnet_binary_classifier.1} parent=0 // pred_check
    _
  $region43: #{resnet_binary_classifier.1} parent=0 // pred_check_branch
    %41 = sbr.rel (0) target = $region45
  $region44: #{resnet_binary_classifier.1} parent=0 // pred_region
    _
  $region45: #{resnet_binary_classifier.1} parent=0 // pred_fallthru
    _
  // Predicated region
  $region46: #{resnet_binary_classifier.1} parent=0 // pred_check
    _
  $region47: #{resnet_binary_classifier.1} parent=0 // pred_check_branch
    %43 = sbr.rel (0) target = $region49
  $region48: #{resnet_binary_classifier.1} parent=0 // pred_region
    _
  $region49: #{resnet_binary_classifier.1} parent=0 // pred_fallthru
    _
  // Predicated region
  $region50: #{resnet_binary_classifier.1} parent=0 // pred_check
    _
  $region51: #{resnet_binary_classifier.1} parent=0 // pred_check_branch
    %45 = sbr.rel (0) target = $region53
  $region52: #{resnet_binary_classifier.1} parent=0 // pred_region
    _
  $region53: #{resnet_binary_classifier.1} parent=0 // pred_fallthru
    _
  // Predicated region
  $region54: #{resnet_binary_classifier.1} parent=0 // pred_check
    _
  $region55: #{resnet_binary_classifier.1} parent=0 // pred_check_branch
    %47 = sbr.rel (0) target = $region57
  $region56: #{resnet_binary_classifier.1} parent=0 // pred_region
    _
  $region57: #{resnet_binary_classifier.1} parent=0 // pred_fallthru
    _
  // Predicated region
  $region58: #{resnet_binary_classifier.1} parent=0 // pred_check
    _
  $region59: #{resnet_binary_classifier.1} parent=0 // pred_check_branch
    %49 = sbr.rel (0) target = $region61
  $region60: #{resnet_binary_classifier.1} parent=0 // pred_region
    _
  $region61: #{resnet_binary_classifier.1} parent=0 // pred_fallthru
    _
  %v50 = vld [vmem:[%s0] sm:$0xff]
  %v51 = vld [vmem:[%s1] sm:$0xff]
  %v52 = vld [vmem:[%s1 + $0x8] sm:$0xff]
  %v53 = vld [vmem:[%s1 + $0x10] sm:$0xff]
  %v54 = vld [vmem:[%s1 + $0x18] sm:$0xff]
  %v55 = vld [vmem:[%s1 + $0x20] sm:$0xff]
  %v56 = vld [vmem:[%s1 + $0x28] sm:$0xff]
  %v57 = vld [vmem:[%s1 + $0x30] sm:$0xff]
  %v58 = vld [vmem:[%s1 + $0x38] sm:$0xff]
  %v59 = vld [vmem:[%s1 + $0x40] sm:$0xff]
  %v60 = vld [vmem:[%s1 + $0x48] sm:$0xff]
  %v61 = vld [vmem:[%s1 + $0x50] sm:$0xff]
  %v62 = vld [vmem:[%s1 + $0x58] sm:$0xff]
  %v63 = vld [vmem:[%s1 + $0x60] sm:$0xff]
  %v64 = vld [vmem:[%s1 + $0x68] sm:$0xff]
  %v65 = vld [vmem:[%s1 + $0x70] sm:$0xff]
  %v66 = vld [vmem:[%s1 + $0x78] sm:$0xff]
  %v67 = vld [vmem:[%s1 + $0x80] sm:$0xff]
  %v68 = vld [vmem:[%s1 + $0x88] sm:$0xff]
  %v69 = vld [vmem:[%s1 + $0x90] sm:$0xff]
  %v70 = vld [vmem:[%s1 + $0x98] sm:$0xff]
  %v71 = vld [vmem:[%s1 + $0xa0] sm:$0xff]
  %v72 = vld [vmem:[%s1 + $0xa8] sm:$0xff]
  %v73 = vld [vmem:[%s1 + $0xb0] sm:$0xff]
  %v74 = vld [vmem:[%s1 + $0xb8] sm:$0xff]
  %v75 = vld [vmem:[%s1 + $0xc0] sm:$0xff]
  %v76 = vld [vmem:[%s1 + $0xc8] sm:$0xff]
  %v77 = vld [vmem:[%s1 + $0xd0] sm:$0xff]
  %v78 = vld [vmem:[%s1 + $0xd8] sm:$0xff]
  %v79 = vld [vmem:[%s1 + $0xe0] sm:$0xff]
  %v80 = vld [vmem:[%s1 + $0xe8] sm:$0xff]
  %v81 = vld [vmem:[%s1 + $0xf0] sm:$0xff]
  %v82 = vld [vmem:[%s1 + $0xf8] sm:$0xff]
  %v83 = vld [vmem:[%s2] sm:$0x3]
  %v84 = vld [vmem:[%s3] sm:$0xff]
  %v85 = vld [vmem:[%s3 + $0x8] sm:$0xff]
  %v86 = vld [vmem:[%s3 + $0x10] sm:$0xff]
  %v87 = vld [vmem:[%s3 + $0x18] sm:$0xff]
  %v88 = vld [vmem:[%s3 + $0x20] sm:$0xff]
  %v89 = vld [vmem:[%s3 + $0x28] sm:$0xff]
  %v90 = vld [vmem:[%s3 + $0x30] sm:$0xff]
  %v91 = vld [vmem:[%s3 + $0x38] sm:$0xff]
  %v92 = vld [vmem:[%s3 + $0x40] sm:$0xff]
  %v93 = vld [vmem:[%s3 + $0x48] sm:$0xff]
  %v94 = vld [vmem:[%s3 + $0x50] sm:$0xff]
  %v95 = vld [vmem:[%s3 + $0x58] sm:$0xff]
  %v96 = vld [vmem:[%s3 + $0x60] sm:$0xff]
  %v97 = vld [vmem:[%s3 + $0x68] sm:$0xff]
  %v98 = vld [vmem:[%s3 + $0x70] sm:$0xff]
  %v99 = vld [vmem:[%s3 + $0x78] sm:$0xff]
  %v100 = vld [vmem:[%s4] sm:$0x1]
  %v102 = vlaneseq
  %v103 = vshrl.u32 %v102, 7
  %v104 = vsub.s32 0, %v103
  %v105 = vrot.slane %v83, %v104
  %v106 = vlaneseq
  %v107 = vshrl.u32 %v106, 7
  %v108 = vsub.s32 1, %v107
  %v109 = vrot.slane %v83, %v108
  %112 = vmatprep.subr.mxu0 %v52
  %113 = vmatpush1.msra.mxu0 %v51
  %114 = vmatprep.subr.mxu0 %v54
  %115 = vmatpush1.msra.mxu0 %v53
  %116 = vmatprep.subr.mxu0 %v56
  %117 = vmatpush1.msra.mxu0 %v55
  %118 = vmatprep.subr.mxu0 %v58
  %119 = vmatpush1.msra.mxu0 %v57
  %120 = vmatprep.subr.mxu0 %v60
  %121 = vmatpush1.msra.mxu0 %v59
  %122 = vmatprep.subr.mxu0 %v62
  %123 = vmatpush1.msra.mxu0 %v61
  %124 = vmatprep.subr.mxu0 %v64
  %125 = vmatpush1.msra.mxu0 %v63
  %126 = vmatprep.subr.mxu0 %v66
  %127 = vmatpush1.msra.mxu0 %v65
  %128 = vmatprep.subr.mxu0 %v68
  %129 = vmatpush1.msra.mxu0 %v67
  %130 = vmatprep.subr.mxu0 %v70
  %131 = vmatpush1.msra.mxu0 %v69
  %132 = vmatprep.subr.mxu0 %v72
  %133 = vmatpush1.msra.mxu0 %v71
  %134 = vmatprep.subr.mxu0 %v74
  %135 = vmatpush1.msra.mxu0 %v73
  %136 = vmatprep.subr.mxu0 %v76
  %137 = vmatpush1.msra.mxu0 %v75
  %138 = vmatprep.subr.mxu0 %v78
  %139 = vmatpush1.msra.mxu0 %v77
  %140 = vmatprep.subr.mxu0 %v80
  %141 = vmatpush1.msra.mxu0 %v79
  %142 = vmatprep.subr.mxu0 %v82
  %143 = vmatpush1.msra.mxu0 %v81
  %144 = vmatprep.subr.mxu0 0.0
  %145 = vmatpush1.msra.mxu0 0.0
  %146 = vmatprep.subr.mxu0 0.0
  %147 = vmatpush1.msra.mxu0 0.0
  %148 = vmatprep.subr.mxu0 0.0
  %149 = vmatpush1.msra.mxu0 0.0
  %150 = vmatprep.subr.mxu0 0.0
  %151 = vmatpush1.msra.mxu0 0.0
  %152 = vmatprep.subr.mxu0 0.0
  %153 = vmatpush1.msra.mxu0 0.0
  %154 = vmatprep.subr.mxu0 0.0
  %155 = vmatpush1.msra.mxu0 0.0
  %156 = vmatprep.subr.mxu0 0.0
  %157 = vmatpush1.msra.mxu0 0.0
  %158 = vmatprep.subr.mxu0 0.0
  %159 = vmatpush1.msra.mxu0 0.0
  %160 = vmatprep.subr.mxu0 0.0
  %161 = vmatpush1.msra.mxu0 0.0
  %162 = vmatprep.subr.mxu0 0.0
  %163 = vmatpush1.msra.mxu0 0.0
  %164 = vmatprep.subr.mxu0 0.0
  %165 = vmatpush1.msra.mxu0 0.0
  %166 = vmatprep.subr.mxu0 0.0
  %167 = vmatpush1.msra.mxu0 0.0
  %168 = vmatprep.subr.mxu0 0.0
  %169 = vmatpush1.msra.mxu0 0.0
  %170 = vmatprep.subr.mxu0 0.0
  %171 = vmatpush1.msra.mxu0 0.0
  %172 = vmatprep.subr.mxu0 0.0
  %173 = vmatpush1.msra.mxu0 0.0
  %174 = vmatprep.subr.mxu0 0.0
  %175 = vmatpush1.msra.mxu0 0.0
  %176 = vmatprep.mubr.f32.mxu0 0.0
  %177 = vmatmul.mubr.f32.gmra.mrb[0].mxu0 %v50
  %v178 = vpop.f32.mrb[0].mxu0
  %v179 = vadd.f32 %v105, %v178
  %v180 = vpop.f32.mrb[0].mxu0
  %v181 = vadd.f32 %v109, %v180
  %182 = vdwg.mxu0
  %v183 = vmax.f32 %v179, 0.0
  %v185 = vlaneseq
  %v186 = vshrl.u32 %v185, 7
  %v187 = vsub.s32 0, %v186
  %v188 = vrot.slane %v100, %v187
  %190 = vmatprep.subr.mxu0 0.0
  %191 = vmatpush1.msra.mxu0 %v84
  %192 = vmatprep.subr.mxu0 0.0
  %193 = vmatpush1.msra.mxu0 %v85
  %194 = vmatprep.subr.mxu0 0.0
  %195 = vmatpush1.msra.mxu0 %v86
  %196 = vmatprep.subr.mxu0 0.0
  %197 = vmatpush1.msra.mxu0 %v87
  %198 = vmatprep.subr.mxu0 0.0
  %199 = vmatpush1.msra.mxu0 %v88
  %200 = vmatprep.subr.mxu0 0.0
  %201 = vmatpush1.msra.mxu0 %v89
  %202 = vmatprep.subr.mxu0 0.0
  %203 = vmatpush1.msra.mxu0 %v90
  %204 = vmatprep.subr.mxu0 0.0
  %205 = vmatpush1.msra.mxu0 %v91
  %206 = vmatprep.subr.mxu0 0.0
  %207 = vmatpush1.msra.mxu0 %v92
  %208 = vmatprep.subr.mxu0 0.0
  %209 = vmatpush1.msra.mxu0 %v93
  %210 = vmatprep.subr.mxu0 0.0
  %211 = vmatpush1.msra.mxu0 %v94
  %212 = vmatprep.subr.mxu0 0.0
  %213 = vmatpush1.msra.mxu0 %v95
  %214 = vmatprep.subr.mxu0 0.0
  %215 = vmatpush1.msra.mxu0 %v96
  %216 = vmatprep.subr.mxu0 0.0
  %217 = vmatpush1.msra.mxu0 %v97
  %218 = vmatprep.subr.mxu0 0.0
  %219 = vmatpush1.msra.mxu0 %v98
  %220 = vmatprep.subr.mxu0 0.0
  %221 = vmatpush1.msra.mxu0 %v99
  %222 = vmatprep.subr.mxu0 0.0
  %223 = vmatpush1.msra.mxu0 0.0
  %224 = vmatprep.subr.mxu0 0.0
  %225 = vmatpush1.msra.mxu0 0.0
  %226 = vmatprep.subr.mxu0 0.0
  %227 = vmatpush1.msra.mxu0 0.0
  %228 = vmatprep.subr.mxu0 0.0
  %229 = vmatpush1.msra.mxu0 0.0
  %230 = vmatprep.subr.mxu0 0.0
  %231 = vmatpush1.msra.mxu0 0.0
  %232 = vmatprep.subr.mxu0 0.0
  %233 = vmatpush1.msra.mxu0 0.0
  %234 = vmatprep.subr.mxu0 0.0
  %235 = vmatpush1.msra.mxu0 0.0
  %236 = vmatprep.subr.mxu0 0.0
  %237 = vmatpush1.msra.mxu0 0.0
  %238 = vmatprep.subr.mxu0 0.0
  %239 = vmatpush1.msra.mxu0 0.0
  %240 = vmatprep.subr.mxu0 0.0
  %241 = vmatpush1.msra.mxu0 0.0
  %242 = vmatprep.subr.mxu0 0.0
  %243 = vmatpush1.msra.mxu0 0.0
  %244 = vmatprep.subr.mxu0 0.0
  %245 = vmatpush1.msra.mxu0 0.0
  %246 = vmatprep.subr.mxu0 0.0
  %247 = vmatpush1.msra.mxu0 0.0
  %248 = vmatprep.subr.mxu0 0.0
  %249 = vmatpush1.msra.mxu0 0.0
  %250 = vmatprep.subr.mxu0 0.0
  %251 = vmatpush1.msra.mxu0 0.0
  %252 = vmatprep.subr.mxu0 0.0
  %253 = vmatpush1.msra.mxu0 0.0
  %254 = vmatprep.mubr.f32.mxu0 0.0
  %255 = vmatmul.mubr.f32.gmra.mrb[0].mxu0 %v183
  %v256 = vpop.f32.mrb[0].mxu0
  %v257 = vadd.f32 %v188, %v256
  %v258 = vpop.f32.mrb[0].mxu0
  %259 = vdwg.mxu0
  %v260 = vadd.f32 %v257, %v181
  %v261 = vmax.f32 %v260, 0.0
  %v262 = vld [vmem:[%s5] sm:$0xff]
  %v263 = vld [vmem:[%s5 + $0x8] sm:$0xff]
  %v264 = vld [vmem:[%s5 + $0x10] sm:$0xff]
  %v265 = vld [vmem:[%s5 + $0x18] sm:$0xff]
  %v266 = vld [vmem:[%s5 + $0x20] sm:$0xff]
  %v267 = vld [vmem:[%s5 + $0x28] sm:$0xff]
  %v268 = vld [vmem:[%s5 + $0x30] sm:$0xff]
  %v269 = vld [vmem:[%s5 + $0x38] sm:$0xff]
  %v270 = vld [vmem:[%s5 + $0x40] sm:$0xff]
  %v271 = vld [vmem:[%s5 + $0x48] sm:$0xff]
  %v272 = vld [vmem:[%s5 + $0x50] sm:$0xff]
  %v273 = vld [vmem:[%s5 + $0x58] sm:$0xff]
  %v274 = vld [vmem:[%s5 + $0x60] sm:$0xff]
  %v275 = vld [vmem:[%s5 + $0x68] sm:$0xff]
  %v276 = vld [vmem:[%s5 + $0x70] sm:$0xff]
  %v277 = vld [vmem:[%s5 + $0x78] sm:$0xff]
  %v278 = vld [vmem:[%s6] sm:$0x1]
  %v279 = vld [vmem:[%s7] sm:$0xff]
  %v280 = vld [vmem:[%s7 + $0x8] sm:$0xff]
  %v281 = vld [vmem:[%s7 + $0x10] sm:$0xff]
  %v282 = vld [vmem:[%s7 + $0x18] sm:$0xff]
  %v283 = vld [vmem:[%s7 + $0x20] sm:$0xff]
  %v284 = vld [vmem:[%s7 + $0x28] sm:$0xff]
  %v285 = vld [vmem:[%s7 + $0x30] sm:$0xff]
  %v286 = vld [vmem:[%s7 + $0x38] sm:$0xff]
  %v287 = vld [vmem:[%s7 + $0x40] sm:$0xff]
  %v288 = vld [vmem:[%s7 + $0x48] sm:$0xff]
  %v289 = vld [vmem:[%s7 + $0x50] sm:$0xff]
  %v290 = vld [vmem:[%s7 + $0x58] sm:$0xff]
  %v291 = vld [vmem:[%s7 + $0x60] sm:$0xff]
  %v292 = vld [vmem:[%s7 + $0x68] sm:$0xff]
  %v293 = vld [vmem:[%s7 + $0x70] sm:$0xff]
  %v294 = vld [vmem:[%s7 + $0x78] sm:$0xff]
  %v295 = vld [vmem:[%s8] sm:$0x1]
  %v297 = vlaneseq
  %v298 = vshrl.u32 %v297, 7
  %v299 = vsub.s32 0, %v298
  %v300 = vrot.slane %v278, %v299
  %302 = vmatprep.subr.mxu0 0.0
  %303 = vmatpush1.msra.mxu0 %v262
  %304 = vmatprep.subr.mxu0 0.0
  %305 = vmatpush1.msra.mxu0 %v263
  %306 = vmatprep.subr.mxu0 0.0
  %307 = vmatpush1.msra.mxu0 %v264
  %308 = vmatprep.subr.mxu0 0.0
  %309 = vmatpush1.msra.mxu0 %v265
  %310 = vmatprep.subr.mxu0 0.0
  %311 = vmatpush1.msra.mxu0 %v266
  %312 = vmatprep.subr.mxu0 0.0
  %313 = vmatpush1.msra.mxu0 %v267
  %314 = vmatprep.subr.mxu0 0.0
  %315 = vmatpush1.msra.mxu0 %v268
  %316 = vmatprep.subr.mxu0 0.0
  %317 = vmatpush1.msra.mxu0 %v269
  %318 = vmatprep.subr.mxu0 0.0
  %319 = vmatpush1.msra.mxu0 %v270
  %320 = vmatprep.subr.mxu0 0.0
  %321 = vmatpush1.msra.mxu0 %v271
  %322 = vmatprep.subr.mxu0 0.0
  %323 = vmatpush1.msra.mxu0 %v272
  %324 = vmatprep.subr.mxu0 0.0
  %325 = vmatpush1.msra.mxu0 %v273
  %326 = vmatprep.subr.mxu0 0.0
  %327 = vmatpush1.msra.mxu0 %v274
  %328 = vmatprep.subr.mxu0 0.0
  %329 = vmatpush1.msra.mxu0 %v275
  %330 = vmatprep.subr.mxu0 0.0
  %331 = vmatpush1.msra.mxu0 %v276
  %332 = vmatprep.subr.mxu0 0.0
  %333 = vmatpush1.msra.mxu0 %v277
  %334 = vmatprep.subr.mxu0 0.0
  %335 = vmatpush1.msra.mxu0 0.0
  %336 = vmatprep.subr.mxu0 0.0
  %337 = vmatpush1.msra.mxu0 0.0
  %338 = vmatprep.subr.mxu0 0.0
  %339 = vmatpush1.msra.mxu0 0.0
  %340 = vmatprep.subr.mxu0 0.0
  %341 = vmatpush1.msra.mxu0 0.0
  %342 = vmatprep.subr.mxu0 0.0
  %343 = vmatpush1.msra.mxu0 0.0
  %344 = vmatprep.subr.mxu0 0.0
  %345 = vmatpush1.msra.mxu0 0.0
  %346 = vmatprep.subr.mxu0 0.0
  %347 = vmatpush1.msra.mxu0 0.0
  %348 = vmatprep.subr.mxu0 0.0
  %349 = vmatpush1.msra.mxu0 0.0
  %350 = vmatprep.subr.mxu0 0.0
  %351 = vmatpush1.msra.mxu0 0.0
  %352 = vmatprep.subr.mxu0 0.0
  %353 = vmatpush1.msra.mxu0 0.0
  %354 = vmatprep.subr.mxu0 0.0
  %355 = vmatpush1.msra.mxu0 0.0
  %356 = vmatprep.subr.mxu0 0.0
  %357 = vmatpush1.msra.mxu0 0.0
  %358 = vmatprep.subr.mxu0 0.0
  %359 = vmatpush1.msra.mxu0 0.0
  %360 = vmatprep.subr.mxu0 0.0
  %361 = vmatpush1.msra.mxu0 0.0
  %362 = vmatprep.subr.mxu0 0.0
  %363 = vmatpush1.msra.mxu0 0.0
  %364 = vmatprep.subr.mxu0 0.0
  %365 = vmatpush1.msra.mxu0 0.0
  %366 = vmatprep.mubr.f32.mxu0 0.0
  %367 = vmatmul.mubr.f32.gmra.mrb[0].mxu0 %v261
  %v368 = vpop.f32.mrb[0].mxu0
  %v369 = vadd.f32 %v300, %v368
  %v370 = vpop.f32.mrb[0].mxu0
  %371 = vdwg.mxu0
  %v372 = vmax.f32 %v369, 0.0
  %v374 = vlaneseq
  %v375 = vshrl.u32 %v374, 7
  %v376 = vsub.s32 0, %v375
  %v377 = vrot.slane %v295, %v376
  %379 = vmatprep.subr.mxu0 0.0
  %380 = vmatpush1.msra.mxu0 %v279
  %381 = vmatprep.subr.mxu0 0.0
  %382 = vmatpush1.msra.mxu0 %v280
  %383 = vmatprep.subr.mxu0 0.0
  %384 = vmatpush1.msra.mxu0 %v281
  %385 = vmatprep.subr.mxu0 0.0
  %386 = vmatpush1.msra.mxu0 %v282
  %387 = vmatprep.subr.mxu0 0.0
  %388 = vmatpush1.msra.mxu0 %v283
  %389 = vmatprep.subr.mxu0 0.0
  %390 = vmatpush1.msra.mxu0 %v284
  %391 = vmatprep.subr.mxu0 0.0
  %392 = vmatpush1.msra.mxu0 %v285
  %393 = vmatprep.subr.mxu0 0.0
  %394 = vmatpush1.msra.mxu0 %v286
  %395 = vmatprep.subr.mxu0 0.0
  %396 = vmatpush1.msra.mxu0 %v287
  %397 = vmatprep.subr.mxu0 0.0
  %398 = vmatpush1.msra.mxu0 %v288
  %399 = vmatprep.subr.mxu0 0.0
  %400 = vmatpush1.msra.mxu0 %v289
  %401 = vmatprep.subr.mxu0 0.0
  %402 = vmatpush1.msra.mxu0 %v290
  %403 = vmatprep.subr.mxu0 0.0
  %404 = vmatpush1.msra.mxu0 %v291
  %405 = vmatprep.subr.mxu0 0.0
  %406 = vmatpush1.msra.mxu0 %v292
  %407 = vmatprep.subr.mxu0 0.0
  %408 = vmatpush1.msra.mxu0 %v293
  %409 = vmatprep.subr.mxu0 0.0
  %410 = vmatpush1.msra.mxu0 %v294
  %411 = vmatprep.subr.mxu0 0.0
  %412 = vmatpush1.msra.mxu0 0.0
  %413 = vmatprep.subr.mxu0 0.0
  %414 = vmatpush1.msra.mxu0 0.0
  %415 = vmatprep.subr.mxu0 0.0
  %416 = vmatpush1.msra.mxu0 0.0
  %417 = vmatprep.subr.mxu0 0.0
  %418 = vmatpush1.msra.mxu0 0.0
  %419 = vmatprep.subr.mxu0 0.0
  %420 = vmatpush1.msra.mxu0 0.0
  %421 = vmatprep.subr.mxu0 0.0
  %422 = vmatpush1.msra.mxu0 0.0
  %423 = vmatprep.subr.mxu0 0.0
  %424 = vmatpush1.msra.mxu0 0.0
  %425 = vmatprep.subr.mxu0 0.0
  %426 = vmatpush1.msra.mxu0 0.0
  %427 = vmatprep.subr.mxu0 0.0
  %428 = vmatpush1.msra.mxu0 0.0
  %429 = vmatprep.subr.mxu0 0.0
  %430 = vmatpush1.msra.mxu0 0.0
  %431 = vmatprep.subr.mxu0 0.0
  %432 = vmatpush1.msra.mxu0 0.0
  %433 = vmatprep.subr.mxu0 0.0
  %434 = vmatpush1.msra.mxu0 0.0
  %435 = vmatprep.subr.mxu0 0.0
  %436 = vmatpush1.msra.mxu0 0.0
  %437 = vmatprep.subr.mxu0 0.0
  %438 = vmatpush1.msra.mxu0 0.0
  %439 = vmatprep.subr.mxu0 0.0
  %440 = vmatpush1.msra.mxu0 0.0
  %441 = vmatprep.subr.mxu0 0.0
  %442 = vmatpush1.msra.mxu0 0.0
  %443 = vmatprep.mubr.f32.mxu0 0.0
  %444 = vmatmul.mubr.f32.gmra.mrb[0].mxu0 %v372
  %v445 = vpop.f32.mrb[0].mxu0
  %v446 = vadd.f32 %v377, %v445
  %v447 = vpop.f32.mrb[0].mxu0
  %448 = vdwg.mxu0
  %v449 = vadd.f32 %v446, %v261
  %v450 = vmax.f32 %v449, 0.0
  %v451 = vld [vmem:[%s9] sm:$0xff]
  %v452 = vld [vmem:[%s9 + $0x8] sm:$0xff]
  %v453 = vld [vmem:[%s9 + $0x10] sm:$0xff]
  %v454 = vld [vmem:[%s9 + $0x18] sm:$0xff]
  %v455 = vld [vmem:[%s9 + $0x20] sm:$0xff]
  %v456 = vld [vmem:[%s9 + $0x28] sm:$0xff]
  %v457 = vld [vmem:[%s9 + $0x30] sm:$0xff]
  %v458 = vld [vmem:[%s9 + $0x38] sm:$0xff]
  %v459 = vld [vmem:[%s9 + $0x40] sm:$0xff]
  %v460 = vld [vmem:[%s9 + $0x48] sm:$0xff]
  %v461 = vld [vmem:[%s9 + $0x50] sm:$0xff]
  %v462 = vld [vmem:[%s9 + $0x58] sm:$0xff]
  %v463 = vld [vmem:[%s9 + $0x60] sm:$0xff]
  %v464 = vld [vmem:[%s9 + $0x68] sm:$0xff]
  %v465 = vld [vmem:[%s9 + $0x70] sm:$0xff]
  %v466 = vld [vmem:[%s9 + $0x78] sm:$0xff]
  %v467 = vld [vmem:[%s9 + $0x80] sm:$0xff]
  %v468 = vld [vmem:[%s9 + $0x88] sm:$0xff]
  %v469 = vld [vmem:[%s9 + $0x90] sm:$0xff]
  %v470 = vld [vmem:[%s9 + $0x98] sm:$0xff]
  %v471 = vld [vmem:[%s9 + $0xa0] sm:$0xff]
  %v472 = vld [vmem:[%s9 + $0xa8] sm:$0xff]
  %v473 = vld [vmem:[%s9 + $0xb0] sm:$0xff]
  %v474 = vld [vmem:[%s9 + $0xb8] sm:$0xff]
  %v475 = vld [vmem:[%s9 + $0xc0] sm:$0xff]
  %v476 = vld [vmem:[%s9 + $0xc8] sm:$0xff]
  %v477 = vld [vmem:[%s9 + $0xd0] sm:$0xff]
  %v478 = vld [vmem:[%s9 + $0xd8] sm:$0xff]
  %v479 = vld [vmem:[%s9 + $0xe0] sm:$0xff]
  %v480 = vld [vmem:[%s9 + $0xe8] sm:$0xff]
  %v481 = vld [vmem:[%s9 + $0xf0] sm:$0xff]
  %v482 = vld [vmem:[%s9 + $0xf8] sm:$0xff]
  %v483 = vld [vmem:[%s10] sm:$0x3]
  %v484 = vld [vmem:[%s11] sm:$0xff]
  %v485 = vld [vmem:[%s11 + $0x8] sm:$0xff]
  %v486 = vld [vmem:[%s11 + $0x10] sm:$0xff]
  %v487 = vld [vmem:[%s11 + $0x18] sm:$0xff]
  %v488 = vld [vmem:[%s11 + $0x20] sm:$0xff]
  %v489 = vld [vmem:[%s11 + $0x28] sm:$0xff]
  %v490 = vld [vmem:[%s11 + $0x30] sm:$0xff]
  %v491 = vld [vmem:[%s11 + $0x38] sm:$0xff]
  %v492 = vld [vmem:[%s11 + $0x40] sm:$0xff]
  %v493 = vld [vmem:[%s11 + $0x48] sm:$0xff]
  %v494 = vld [vmem:[%s11 + $0x50] sm:$0xff]
  %v495 = vld [vmem:[%s11 + $0x58] sm:$0xff]
  %v496 = vld [vmem:[%s11 + $0x60] sm:$0xff]
  %v497 = vld [vmem:[%s11 + $0x68] sm:$0xff]
  %v498 = vld [vmem:[%s11 + $0x70] sm:$0xff]
  %v499 = vld [vmem:[%s11 + $0x78] sm:$0xff]
  %v500 = vld [vmem:[%s12] sm:$0x1]
  %v502 = vlaneseq
  %v503 = vshrl.u32 %v502, 7
  %v504 = vsub.s32 0, %v503
  %v505 = vrot.slane %v483, %v504
  %v506 = vlaneseq
  %v507 = vshrl.u32 %v506, 7
  %v508 = vsub.s32 1, %v507
  %v509 = vrot.slane %v483, %v508
  %512 = vmatprep.subr.mxu0 %v452
  %513 = vmatpush1.msra.mxu0 %v451
  %514 = vmatprep.subr.mxu0 %v454
  %515 = vmatpush1.msra.mxu0 %v453
  %516 = vmatprep.subr.mxu0 %v456
  %517 = vmatpush1.msra.mxu0 %v455
  %518 = vmatprep.subr.mxu0 %v458
  %519 = vmatpush1.msra.mxu0 %v457
  %520 = vmatprep.subr.mxu0 %v460
  %521 = vmatpush1.msra.mxu0 %v459
  %522 = vmatprep.subr.mxu0 %v462
  %523 = vmatpush1.msra.mxu0 %v461
  %524 = vmatprep.subr.mxu0 %v464
  %525 = vmatpush1.msra.mxu0 %v463
  %526 = vmatprep.subr.mxu0 %v466
  %527 = vmatpush1.msra.mxu0 %v465
  %528 = vmatprep.subr.mxu0 %v468
  %529 = vmatpush1.msra.mxu0 %v467
  %530 = vmatprep.subr.mxu0 %v470
  %531 = vmatpush1.msra.mxu0 %v469
  %532 = vmatprep.subr.mxu0 %v472
  %533 = vmatpush1.msra.mxu0 %v471
  %534 = vmatprep.subr.mxu0 %v474
  %535 = vmatpush1.msra.mxu0 %v473
  %536 = vmatprep.subr.mxu0 %v476
  %537 = vmatpush1.msra.mxu0 %v475
  %538 = vmatprep.subr.mxu0 %v478
  %539 = vmatpush1.msra.mxu0 %v477
  %540 = vmatprep.subr.mxu0 %v480
  %541 = vmatpush1.msra.mxu0 %v479
  %542 = vmatprep.subr.mxu0 %v482
  %543 = vmatpush1.msra.mxu0 %v481
  %544 = vmatprep.subr.mxu0 0.0
  %545 = vmatpush1.msra.mxu0 0.0
  %546 = vmatprep.subr.mxu0 0.0
  %547 = vmatpush1.msra.mxu0 0.0
  %548 = vmatprep.subr.mxu0 0.0
  %549 = vmatpush1.msra.mxu0 0.0
  %550 = vmatprep.subr.mxu0 0.0
  %551 = vmatpush1.msra.mxu0 0.0
  %552 = vmatprep.subr.mxu0 0.0
  %553 = vmatpush1.msra.mxu0 0.0
  %554 = vmatprep.subr.mxu0 0.0
  %555 = vmatpush1.msra.mxu0 0.0
  %556 = vmatprep.subr.mxu0 0.0
  %557 = vmatpush1.msra.mxu0 0.0
  %558 = vmatprep.subr.mxu0 0.0
  %559 = vmatpush1.msra.mxu0 0.0
  %560 = vmatprep.subr.mxu0 0.0
  %561 = vmatpush1.msra.mxu0 0.0
  %562 = vmatprep.subr.mxu0 0.0
  %563 = vmatpush1.msra.mxu0 0.0
  %564 = vmatprep.subr.mxu0 0.0
  %565 = vmatpush1.msra.mxu0 0.0
  %566 = vmatprep.subr.mxu0 0.0
  %567 = vmatpush1.msra.mxu0 0.0
  %568 = vmatprep.subr.mxu0 0.0
  %569 = vmatpush1.msra.mxu0 0.0
  %570 = vmatprep.subr.mxu0 0.0
  %571 = vmatpush1.msra.mxu0 0.0
  %572 = vmatprep.subr.mxu0 0.0
  %573 = vmatpush1.msra.mxu0 0.0
  %574 = vmatprep.subr.mxu0 0.0
  %575 = vmatpush1.msra.mxu0 0.0
  %576 = vmatprep.mubr.f32.mxu0 0.0
  %577 = vmatmul.mubr.f32.gmra.mrb[0].mxu0 %v450
  %v578 = vpop.f32.mrb[0].mxu0
  %v579 = vadd.f32 %v505, %v578
  %v580 = vpop.f32.mrb[0].mxu0
  %v581 = vadd.f32 %v509, %v580
  %582 = vdwg.mxu0
  %v583 = vmax.f32 %v579, 0.0
  %v585 = vlaneseq
  %v586 = vshrl.u32 %v585, 7
  %v587 = vsub.s32 0, %v586
  %v588 = vrot.slane %v500, %v587
  %590 = vmatprep.subr.mxu0 0.0
  %591 = vmatpush1.msra.mxu0 %v484
  %592 = vmatprep.subr.mxu0 0.0
  %593 = vmatpush1.msra.mxu0 %v485
  %594 = vmatprep.subr.mxu0 0.0
  %595 = vmatpush1.msra.mxu0 %v486
  %596 = vmatprep.subr.mxu0 0.0
  %597 = vmatpush1.msra.mxu0 %v487
  %598 = vmatprep.subr.mxu0 0.0
  %599 = vmatpush1.msra.mxu0 %v488
  %600 = vmatprep.subr.mxu0 0.0
  %601 = vmatpush1.msra.mxu0 %v489
  %602 = vmatprep.subr.mxu0 0.0
  %603 = vmatpush1.msra.mxu0 %v490
  %604 = vmatprep.subr.mxu0 0.0
  %605 = vmatpush1.msra.mxu0 %v491
  %606 = vmatprep.subr.mxu0 0.0
  %607 = vmatpush1.msra.mxu0 %v492
  %608 = vmatprep.subr.mxu0 0.0
  %609 = vmatpush1.msra.mxu0 %v493
  %610 = vmatprep.subr.mxu0 0.0
  %611 = vmatpush1.msra.mxu0 %v494
  %612 = vmatprep.subr.mxu0 0.0
  %613 = vmatpush1.msra.mxu0 %v495
  %614 = vmatprep.subr.mxu0 0.0
  %615 = vmatpush1.msra.mxu0 %v496
  %616 = vmatprep.subr.mxu0 0.0
  %617 = vmatpush1.msra.mxu0 %v497
  %618 = vmatprep.subr.mxu0 0.0
  %619 = vmatpush1.msra.mxu0 %v498
  %620 = vmatprep.subr.mxu0 0.0
  %621 = vmatpush1.msra.mxu0 %v499
  %622 = vmatprep.subr.mxu0 0.0
  %623 = vmatpush1.msra.mxu0 0.0
  %624 = vmatprep.subr.mxu0 0.0
  %625 = vmatpush1.msra.mxu0 0.0
  %626 = vmatprep.subr.mxu0 0.0
  %627 = vmatpush1.msra.mxu0 0.0
  %628 = vmatprep.subr.mxu0 0.0
  %629 = vmatpush1.msra.mxu0 0.0
  %630 = vmatprep.subr.mxu0 0.0
  %631 = vmatpush1.msra.mxu0 0.0
  %632 = vmatprep.subr.mxu0 0.0
  %633 = vmatpush1.msra.mxu0 0.0
  %634 = vmatprep.subr.mxu0 0.0
  %635 = vmatpush1.msra.mxu0 0.0
  %636 = vmatprep.subr.mxu0 0.0
  %637 = vmatpush1.msra.mxu0 0.0
  %638 = vmatprep.subr.mxu0 0.0
  %639 = vmatpush1.msra.mxu0 0.0
  %640 = vmatprep.subr.mxu0 0.0
  %641 = vmatpush1.msra.mxu0 0.0
  %642 = vmatprep.subr.mxu0 0.0
  %643 = vmatpush1.msra.mxu0 0.0
  %644 = vmatprep.subr.mxu0 0.0
  %645 = vmatpush1.msra.mxu0 0.0
  %646 = vmatprep.subr.mxu0 0.0
  %647 = vmatpush1.msra.mxu0 0.0
  %648 = vmatprep.subr.mxu0 0.0
  %649 = vmatpush1.msra.mxu0 0.0
  %650 = vmatprep.subr.mxu0 0.0
  %651 = vmatpush1.msra.mxu0 0.0
  %652 = vmatprep.subr.mxu0 0.0
  %653 = vmatpush1.msra.mxu0 0.0
  %654 = vmatprep.mubr.f32.mxu0 0.0
  %655 = vmatmul.mubr.f32.gmra.mrb[0].mxu0 %v583
  %v656 = vpop.f32.mrb[0].mxu0
  %v657 = vadd.f32 %v588, %v656
  %v658 = vpop.f32.mrb[0].mxu0
  %659 = vdwg.mxu0
  %v660 = vadd.f32 %v657, %v581
  %v661 = vmax.f32 %v660, 0.0
  %v662 = vld [vmem:[%s13] sm:$0xff]
  %v663 = vld [vmem:[%s13 + $0x8] sm:$0xff]
  %v664 = vld [vmem:[%s13 + $0x10] sm:$0xff]
  %v665 = vld [vmem:[%s13 + $0x18] sm:$0xff]
  %v666 = vld [vmem:[%s13 + $0x20] sm:$0xff]
  %v667 = vld [vmem:[%s13 + $0x28] sm:$0xff]
  %v668 = vld [vmem:[%s13 + $0x30] sm:$0xff]
  %v669 = vld [vmem:[%s13 + $0x38] sm:$0xff]
  %v670 = vld [vmem:[%s13 + $0x40] sm:$0xff]
  %v671 = vld [vmem:[%s13 + $0x48] sm:$0xff]
  %v672 = vld [vmem:[%s13 + $0x50] sm:$0xff]
  %v673 = vld [vmem:[%s13 + $0x58] sm:$0xff]
  %v674 = vld [vmem:[%s13 + $0x60] sm:$0xff]
  %v675 = vld [vmem:[%s13 + $0x68] sm:$0xff]
  %v676 = vld [vmem:[%s13 + $0x70] sm:$0xff]
  %v677 = vld [vmem:[%s13 + $0x78] sm:$0xff]
  %v678 = vld [vmem:[%s14] sm:$0x1]
  %v680 = vlaneseq
  %v681 = vshrl.u32 %v680, 7
  %v682 = vsub.s32 0, %v681
  %v683 = vrot.slane %v678, %v682
  %685 = vmatprep.subr.mxu0 0.0
  %686 = vmatpush1.msra.mxu0 %v662
  %687 = vmatprep.subr.mxu0 0.0
  %688 = vmatpush1.msra.mxu0 %v663
  %689 = vmatprep.subr.mxu0 0.0
  %690 = vmatpush1.msra.mxu0 %v664
  %691 = vmatprep.subr.mxu0 0.0
  %692 = vmatpush1.msra.mxu0 %v665
  %693 = vmatprep.subr.mxu0 0.0
  %694 = vmatpush1.msra.mxu0 %v666
  %695 = vmatprep.subr.mxu0 0.0
  %696 = vmatpush1.msra.mxu0 %v667
  %697 = vmatprep.subr.mxu0 0.0
  %698 = vmatpush1.msra.mxu0 %v668
  %699 = vmatprep.subr.mxu0 0.0
  %700 = vmatpush1.msra.mxu0 %v669
  %701 = vmatprep.subr.mxu0 0.0
  %702 = vmatpush1.msra.mxu0 %v670
  %703 = vmatprep.subr.mxu0 0.0
  %704 = vmatpush1.msra.mxu0 %v671
  %705 = vmatprep.subr.mxu0 0.0
  %706 = vmatpush1.msra.mxu0 %v672
  %707 = vmatprep.subr.mxu0 0.0
  %708 = vmatpush1.msra.mxu0 %v673
  %709 = vmatprep.subr.mxu0 0.0
  %710 = vmatpush1.msra.mxu0 %v674
  %711 = vmatprep.subr.mxu0 0.0
  %712 = vmatpush1.msra.mxu0 %v675
  %713 = vmatprep.subr.mxu0 0.0
  %714 = vmatpush1.msra.mxu0 %v676
  %715 = vmatprep.subr.mxu0 0.0
  %716 = vmatpush1.msra.mxu0 %v677
  %717 = vmatprep.subr.mxu0 0.0
  %718 = vmatpush1.msra.mxu0 0.0
  %719 = vmatprep.subr.mxu0 0.0
  %720 = vmatpush1.msra.mxu0 0.0
  %721 = vmatprep.subr.mxu0 0.0
  %722 = vmatpush1.msra.mxu0 0.0
  %723 = vmatprep.subr.mxu0 0.0
  %724 = vmatpush1.msra.mxu0 0.0
  %725 = vmatprep.subr.mxu0 0.0
  %726 = vmatpush1.msra.mxu0 0.0
  %727 = vmatprep.subr.mxu0 0.0
  %728 = vmatpush1.msra.mxu0 0.0
  %729 = vmatprep.subr.mxu0 0.0
  %730 = vmatpush1.msra.mxu0 0.0
  %731 = vmatprep.subr.mxu0 0.0
  %732 = vmatpush1.msra.mxu0 0.0
  %733 = vmatprep.subr.mxu0 0.0
  %734 = vmatpush1.msra.mxu0 0.0
  %735 = vmatprep.subr.mxu0 0.0
  %736 = vmatpush1.msra.mxu0 0.0
  %737 = vmatprep.subr.mxu0 0.0
  %738 = vmatpush1.msra.mxu0 0.0
  %739 = vmatprep.subr.mxu0 0.0
  %740 = vmatpush1.msra.mxu0 0.0
  %741 = vmatprep.subr.mxu0 0.0
  %742 = vmatpush1.msra.mxu0 0.0
  %743 = vmatprep.subr.mxu0 0.0
  %744 = vmatpush1.msra.mxu0 0.0
  %745 = vmatprep.subr.mxu0 0.0
  %746 = vmatpush1.msra.mxu0 0.0
  %747 = vmatprep.subr.mxu0 0.0
  %748 = vmatpush1.msra.mxu0 0.0
  %749 = vmatprep.mubr.f32.mxu0 0.0
  %750 = vmatmul.mubr.f32.gmra.mrb[0].mxu0 %v661
  %v751 = vpop.f32.mrb[0].mxu0
  %v752 = vadd.f32 %v683, %v751
  %v753 = vpop.f32.mrb[0].mxu0
  %754 = vdwg.mxu0
  %v755 = vxor.u32 %v752, 2147483648
  %v756 = vmul.f32 %v755, 1.442695
  %v757 = vpow.pop %v756
  %v758 = vadd.f32 %v757, 1.0
  %v759 = vrcp.pop %v758
  %v760 = vmul.f32 1.0, %v759
  %761 = vst [vmem:[%s15] sm:$0xff] %v760
  // Predicated region
  $region62: #{resnet_binary_classifier.1} parent=0 // pred_check
    _
  $region63: #{resnet_binary_classifier.1} parent=0 // pred_check_branch
    %763 = sbr.rel (0) target = $region65
  $region64: #{resnet_binary_classifier.1} parent=0 // pred_region
    _
  $region65: #{resnet_binary_classifier.1} parent=0 // pred_fallthru
    _
  // Predicated region
  $region66: #{resnet_binary_classifier.1} parent=0 // pred_check
    _
  $region67: #{resnet_binary_classifier.1} parent=0 // pred_check_branch
    %765 = sbr.rel (0) target = $region69
  $region68: #{resnet_binary_classifier.1} parent=0 // pred_region
    _
  $region69: #{resnet_binary_classifier.1} parent=0 // pred_fallthru
    _

</llo_original>
